<compile_context>
chip_gen: v5e
topology: v5e:2x2
jax: 0.10.0
libtpu: 0.0.40
codegen_flags: <defaults>
</compile_context>

<pallas_src>
import jax
import jax.numpy as jnp
from jax.experimental import pallas as pl
from jax.experimental.pallas import tpu as pltpu


def _round_up(x, m):
    return ((x + m - 1) // m) * m


# ---------------------------------------------------------------------------
# Kernel bodies
# ---------------------------------------------------------------------------
def _linear_kernel(x_ref, w_ref, b_ref, o_ref):
    # Z1 tile = x_tile @ W1 + b1   (f32 MXU accumulation, stored bf16)
    z = jnp.dot(x_ref[...], w_ref[...], preferred_element_type=jnp.float32)
    o_ref[...] = (z + b_ref[...]).astype(o_ref.dtype)


def _layer1_kernel(a1_ref, z1_ref, w2_ref, b2_ref, o_ref):
    # H2 tile = relu(A1_tile @ Z1) @ W2 + b2
    h = jnp.dot(a1_ref[...], z1_ref[...], preferred_element_type=jnp.float32)
    h = jnp.maximum(h, 0.0).astype(jnp.bfloat16)
    h2 = jnp.dot(h, w2_ref[...], preferred_element_type=jnp.float32)
    o_ref[...] = (h2 + b2_ref[...]).astype(o_ref.dtype)


def _layer2_kernel(a2_ref, h2_ref, o_ref):
    # out tile = A2_tile @ H2
    o_ref[...] = jnp.dot(a2_ref[...], h2_ref[...],
                         preferred_element_type=jnp.float32
                         ).astype(o_ref.dtype)


# ---------------------------------------------------------------------------
# pallas_call wrappers (row-tiled grid, "parallel" for megacore)
# ---------------------------------------------------------------------------
_VMEM_LIMIT = 32 * 1024 * 1024  # fits physical VMEM on v5e/v6e/v7x


def _compiler_params():
    return pltpu.CompilerParams(dimension_semantics=("parallel",),
                                vmem_limit_bytes=_VMEM_LIMIT)


def _linear_pallas(x_pad, w1_pad, b1_pad, tile_m):
    n_pad, in_p = x_pad.shape
    hid_p = w1_pad.shape[1]
    cost = pl.CostEstimate(
        flops=2 * n_pad * in_p * hid_p,
        transcendentals=0,
        bytes_accessed=n_pad * in_p * 4 + in_p * hid_p * 4 + n_pad * hid_p * 2)
    return pl.pallas_call(
        _linear_kernel,
        out_shape=jax.ShapeDtypeStruct((n_pad, hid_p), jnp.bfloat16),
        grid=(n_pad // tile_m,),
        in_specs=[
            pl.BlockSpec((tile_m, in_p), lambda i: (i, 0)),   # streamed x
            pl.BlockSpec((in_p, hid_p), lambda i: (0, 0)),    # resident W1
            pl.BlockSpec((1, hid_p), lambda i: (0, 0)),       # resident b1
        ],
        out_specs=pl.BlockSpec((tile_m, hid_p), lambda i: (i, 0)),
        compiler_params=_compiler_params(),
        cost_estimate=cost,
    )(x_pad, w1_pad, b1_pad)


def _layer1_pallas(a1, z1, w2_pad, b2_pad, tile_m):
    n_pad = a1.shape[0]
    hid_p = z1.shape[1]
    out_p = w2_pad.shape[1]
    cost = pl.CostEstimate(
        flops=2 * n_pad * n_pad * hid_p + 2 * n_pad * hid_p * out_p,
        transcendentals=0,
        bytes_accessed=(n_pad * n_pad * 2 + n_pad * hid_p * 2
                        + hid_p * out_p * 2 + n_pad * out_p * 2))
    return pl.pallas_call(
        _layer1_kernel,
        out_shape=jax.ShapeDtypeStruct((n_pad, out_p), jnp.bfloat16),
        grid=(n_pad // tile_m,),
        in_specs=[
            pl.BlockSpec((tile_m, n_pad), lambda i: (i, 0)),  # streamed A1
            pl.BlockSpec((n_pad, hid_p), lambda i: (0, 0)),   # resident Z1
            pl.BlockSpec((hid_p, out_p), lambda i: (0, 0)),   # resident W2
            pl.BlockSpec((1, out_p), lambda i: (0, 0)),       # resident b2
        ],
        out_specs=pl.BlockSpec((tile_m, out_p), lambda i: (i, 0)),
        compiler_params=_compiler_params(),
        cost_estimate=cost,
    )(a1, z1, w2_pad, b2_pad)


def _layer2_pallas(a2, h2, tile_m):
    n_pad = a2.shape[0]
    out_p = h2.shape[1]
    cost = pl.CostEstimate(
        flops=2 * n_pad * n_pad * out_p,
        transcendentals=0,
        bytes_accessed=n_pad * n_pad * 2 + n_pad * out_p * 2 + n_pad * out_p * 4)
    return pl.pallas_call(
        _layer2_kernel,
        out_shape=jax.ShapeDtypeStruct((n_pad, out_p), jnp.float32),
        grid=(n_pad // tile_m,),
        in_specs=[
            pl.BlockSpec((tile_m, n_pad), lambda i: (i, 0)),  # streamed A2
            pl.BlockSpec((n_pad, out_p), lambda i: (0, 0)),   # resident H2
        ],
        out_specs=pl.BlockSpec((tile_m, out_p), lambda i: (i, 0)),
        compiler_params=_compiler_params(),
        cost_estimate=cost,
    )(a2, h2)


# ---------------------------------------------------------------------------
# Plain-JAX glue: normalized dense adjacency for DirectedGCNConv (add aggr)
# ---------------------------------------------------------------------------
def build_norm_adj(edge_index, num_nodes, n_pad, alpha=1.0, beta=0.0,
                   self_loops=True, dtype=jnp.bfloat16):
    """A[target, source] = in_deg(target)^-alpha * out_deg(source)^-beta,
    summed over (possibly duplicate) edges, in a zero-padded [n_pad, n_pad]."""
    row = edge_index[0]
    col = edge_index[1]
    if self_loops:
        loop = jnp.arange(num_nodes, dtype=row.dtype)
        row = jnp.concatenate([row, loop])
        col = jnp.concatenate([col, loop])
    in_deg = jnp.zeros((num_nodes,), jnp.float32).at[col].add(1.0)
    out_deg = jnp.zeros((num_nodes,), jnp.float32).at[row].add(1.0)
    in_norm_inv = jnp.power(in_deg, -alpha)     # 1/in_degree  (alpha = 1)
    out_norm_inv = jnp.power(out_deg, -beta)    # all ones     (beta  = 0)
    norm = in_norm_inv[col] * out_norm_inv[row]
    adj = jnp.zeros((n_pad, n_pad), jnp.float32)
    adj = adj.at[col, row].add(norm)            # accumulate in f32, then cast
    return adj.astype(dtype)


def target_gcn_conv_encoder(x, edge_index, params, alpha=1.0, beta=0.0,
                            self_loops=True, tile_m=None):
    """Forward of TargetGCNConvEncoder:
       x = relu(conv1(x, flip(edge_index))); x = conv2(x, edge_index)"""
    w1, b1, w2, b2 = params                     # w: [in, out], b: [out]
    n, in_c = x.shape
    hid_c = w1.shape[1]
    out_c = w2.shape[1]

    # Lane-dense channel padding (multiples of 128).
    in_p = _round_up(in_c, 128)
    hid_p = _round_up(hid_c, 128)
    out_p = _round_up(out_c, 128)

    # Row-tile size: biggest multiple of 128 with a double-buffered bf16
    # A-tile pair fitting in ~16 MiB (portable to v7x's smaller VMEM).
    n128 = _round_up(n, 128)
    if tile_m is None:
        budget = 8 * 1024 * 1024                # one of the two tile buffers
        tile_m = (budget // (n128 * 2)) // 128 * 128
        tile_m = max(128, min(1024, tile_m))
    tile_m = min(tile_m, n128)
    n_pad = _round_up(n, tile_m)

    f32 = jnp.float32
    x_pad = jnp.zeros((n_pad, in_p), f32).at[:n, :in_c].set(x.astype(f32))
    w1_pad = jnp.zeros((in_p, hid_p), f32).at[:in_c, :hid_c].set(w1)
    b1_pad = jnp.zeros((1, hid_p), f32).at[0, :hid_c].set(b1.reshape(-1))
    w2_pad = jnp.zeros((hid_p, out_p), jnp.bfloat16).at[:hid_c, :out_c].set(
        w2.astype(jnp.bfloat16))
    b2_pad = jnp.zeros((1, out_p), f32).at[0, :out_c].set(b2.reshape(-1))

    # conv1 sees the flipped edge_index (torch.flip(edge_index, [0])).
    a1 = build_norm_adj(jnp.flip(edge_index, axis=0), n, n_pad, alpha, beta,
                        self_loops, dtype=jnp.bfloat16)
    a2 = build_norm_adj(edge_index, n, n_pad, alpha, beta, self_loops,
                        dtype=jnp.bfloat16)

    z1 = _linear_pallas(x_pad, w1_pad, b1_pad, tile_m)          # [n_pad, hid_p] bf16
    h2 = _layer1_pallas(a1, z1, w2_pad, b2_pad, tile_m)         # [n_pad, out_p] bf16
    out = _layer2_pallas(a2, h2, tile_m)                        # [n_pad, out_p] f32
    return out[:n, :out_c]


# ---------------------------------------------------------------------------
# Pure-JAX f32 reference (same math, no Pallas, no padding, no bf16)
# ---------------------------------------------------------------------------
def _reference(x, edge_index, params, alpha=1.0, beta=0.0, self_loops=True):
    n = x.shape[0]
    w1, b1, w2, b2 = params
    a1 = build_norm_adj(jnp.flip(edge_index, axis=0), n, n, alpha, beta,
                        self_loops, dtype=jnp.float32)
    a2 = build_norm_adj(edge_index, n, n, alpha, beta, self_loops,
                        dtype=jnp.float32)
    h = jnp.maximum(a1 @ (x @ w1 + b1.reshape(1, -1)), 0.0)
    return a2 @ (h @ w2 + b2.reshape(1, -1))


if __name__ == "__main__":
    # Small synthetic problem consistent with the module's graph inputs.
    num_nodes = 300          # pads to 384 -> 3 row tiles of 128
    in_channels = 8
    hidden_channels = 32
    out_channels = 16
    num_edges = 900

    key = jax.random.PRNGKey(0)
    k_x, k_e, k_w1, k_b1, k_w2, k_b2 = jax.random.split(key, 6)

    # Node features [N, C_in] and directed edge_index [2, E].
    x = jax.random.normal(k_x, (num_nodes, in_channels), dtype=jnp.float32)
    edge_index = jax.random.randint(k_e, (2, num_edges), 0, num_nodes,
                                    dtype=jnp.int32)

    # nn.Linear params, stored pre-transposed as [in, out]; biases as [out].
    w1 = (jax.random.normal(k_w1, (in_channels, hidden_channels),
                            dtype=jnp.float32) / jnp.sqrt(in_channels))
    b1 = jax.random.normal(k_b1, (hidden_channels,), dtype=jnp.float32) * 0.1
    w2 = (jax.random.normal(k_w2, (hidden_channels, out_channels),
                            dtype=jnp.float32) / jnp.sqrt(hidden_channels))
    b2 = jax.random.normal(k_b2, (out_channels,), dtype=jnp.float32) * 0.1
    params = (w1, b1, w2, b2)

    out = target_gcn_conv_encoder(x, edge_index, params, tile_m=128)
    out = jax.block_until_ready(out)

    ref = jax.block_until_ready(_reference(x, edge_index, params))
    assert out.shape == (num_nodes, out_channels)
    # bf16 adjacency/activation streaming -> compare at bf16-level tolerance.
    assert jnp.allclose(out, ref, atol=3e-2, rtol=3e-2), \
        float(jnp.max(jnp.abs(out - ref)))

    print("KERNEL_OK")
</pallas_src>

<mosaic_0001>
module attributes {stable_mosaic.version = 11 : i64} {
  func.func @_linear_kernel(%arg0: i32, %arg1: memref<128x128xf32, #tpu.memory_space<vmem>>, %arg2: memref<128x128xf32, #tpu.memory_space<vmem>>, %arg3: memref<1x128xf32, #tpu.memory_space<vmem>>, %arg4: memref<128x128xbf16, #tpu.memory_space<vmem>>) attributes {dimension_semantics = [#tpu.dimension_semantics<parallel>], iteration_bounds = array<i64: 3>, scalar_prefetch = 0 : i64, scratch_operands = 0 : i64, tpu.core_type = #tpu.core_type<tc>, window_params = [{transform_indices = @transform_0, window_bounds = array<i64: 128, 128>}, {pipeline_mode = #tpu.pipeline_mode<synchronous>, transform_indices = @transform_1, window_bounds = array<i64: 128, 128>}, {pipeline_mode = #tpu.pipeline_mode<synchronous>, transform_indices = @transform_2, window_bounds = array<i64: 1, 128>}, {transform_indices = @transform_3, window_bounds = array<i64: 128, 128>}]} {
    %c0 = arith.constant 0 : index
    %c0_0 = arith.constant 0 : index
    %0 = vector.load %arg1[%c0, %c0_0] : memref<128x128xf32, #tpu.memory_space<vmem>>, vector<128x128xf32>
    %c0_1 = arith.constant 0 : index
    %c0_2 = arith.constant 0 : index
    %1 = vector.load %arg2[%c0_1, %c0_2] : memref<128x128xf32, #tpu.memory_space<vmem>>, vector<128x128xf32>
    %cst = arith.constant dense<0.000000e+00> : vector<128x128xf32>
    %2 = tpu.matmul %0, %1, %cst {dimension_numbers = #tpu.dot_dimension_numbers<[1], [0], [0], [1], [0, 0, 1, 1], [], []>} : vector<128x128xf32>, vector<128x128xf32>, vector<128x128xf32> -> vector<128x128xf32>
    %c0_3 = arith.constant 0 : index
    %c0_4 = arith.constant 0 : index
    %3 = vector.load %arg3[%c0_3, %c0_4] : memref<1x128xf32, #tpu.memory_space<vmem>>, vector<1x128xf32>
    %4 = vector.broadcast %3 : vector<1x128xf32> to vector<128x128xf32>
    %5 = arith.addf %2, %4 : vector<128x128xf32>
    %6 = arith.truncf %5 : vector<128x128xf32> to vector<128x128xbf16>
    %c0_5 = arith.constant 0 : index
    %c0_6 = arith.constant 0 : index
    %7 = vector.load %arg4[%c0_5, %c0_6] : memref<128x128xbf16, #tpu.memory_space<vmem>>, vector<128x128xbf16>
    tpu.vector_store %arg4[%c0_5, %c0_6], %6 {strides = array<i32>} : memref<128x128xbf16, #tpu.memory_space<vmem>>, vector<128x128xbf16>,
    return
  }
  func.func @transform_0(%arg0: i32) -> (i32, i32) {
    %c0_i32 = arith.constant 0 : i32
    %c0_i32_0 = arith.constant 0 : i32
    return %arg0, %c0_i32 : i32, i32
  }
  func.func @transform_1(%arg0: i32) -> (i32, i32) {
    %c0_i32 = arith.constant 0 : i32
    %c0_i32_0 = arith.constant 0 : i32
    %c0_i32_1 = arith.constant 0 : i32
    return %c0_i32, %c0_i32_0 : i32, i32
  }
  func.func @transform_2(%arg0: i32) -> (i32, i32) {
    %c0_i32 = arith.constant 0 : i32
    %c0_i32_0 = arith.constant 0 : i32
    %c0_i32_1 = arith.constant 0 : i32
    return %c0_i32, %c0_i32_0 : i32, i32
  }
  func.func @transform_3(%arg0: i32) -> (i32, i32) {
    %c0_i32 = arith.constant 0 : i32
    %c0_i32_0 = arith.constant 0 : i32
    return %arg0, %c0_i32 : i32, i32
  }
}

</mosaic_0001>

<llo_original>
// kernel: tpu_custom_call.1
$region0: #{tpu_custom_call.1}
  #allocation0 [shape = 'u32[]', space=smem, size = 0x4, offset = 0x4, fixed_abs, tag = 'smem constant byte address 0x4 - core index']
  #allocation1 [shape = 'u32[72,128]{1,0:T(1,128)}', space=vmem, size = 0x9000, scoped, tag = 'internal scratch']
  %s0 = inlined_call_operand.hbm [shape: f32[384,128], index: 0, kind: input, shape index: {}]
  %s1 = inlined_call_operand.hbm [shape: f32[128,128], index: 1, kind: input, shape index: {}]
  %s2 = inlined_call_operand.vmem [shape: f32[1,128], index: 2, kind: input, shape index: {}]
  %s3 = inlined_call_operand.hbm [shape: bf16[384,128], index: 3, kind: output, shape index: {}]
  %s4 = sld [smem:[#allocation0]]
  $region53: #{tpu_custom_call.1} parent=0
    _
  %s6 = ssub.s32 1, %s4
  %s7 = scalar_select 0, %s6, %s4
  $region1: #{tpu_custom_call.1} parent=0
    #allocation2 [shape = 'u8[131072]{0}', space=vmem, size = 0x20000, scoped, tag = 'input window, operand 0']
    #allocation3 [shape = 's32[2]{0}', space=sflag, size = 0x8, scoped, tag = 'scoped memory for tpu_custom_call.1']
    #allocation4 [shape = 's32[2]{0}', space=sflag, size = 0x8, scoped, tag = 'scoped memory for tpu_custom_call.1']
    #allocation5 [shape = 'u8[65536]{0}', space=vmem, size = 0x10000, scoped, tag = 'input window, operand 1, single buffered']
    #allocation6 [shape = 's32[1]{0}', space=sflag, size = 0x4, scoped, tag = 'scoped memory for tpu_custom_call.1']
    #allocation7 [shape = 'u8[65536]{0}', space=vmem, size = 0x10000, scoped, tag = 'output window, operand 0']
    %8 = vsyncpa [#allocation3], 0
    %s9 = scalar_lea.sflag [#allocation3], 1
    %10 = vsyncpa %s9, 0
    %11 = vsyncpa [#allocation6], 0
    %12 = vsyncpa [#allocation4], 0
    %s13 = scalar_lea.sflag [#allocation4], 1
    %14 = vsyncpa %s13, 0
    loop: start=0, step=1, limit=5
    $region2: #{tpu_custom_call.1} parent=1 // loop_pre_header
      _
    $region3: #{tpu_custom_call.1} parent=1 // loop_header
      %s16 = sphi 0, %s20
      %p17 = scmp.ge.s32.totalorder %s16, 5
      %s26 = sphi 0, %s28
      %s29 = sphi 0, %s26
      %s30 = sphi 0, %s29
      %s46 = sphi 0, %s30
      %s50 = sphi 0, %s50
      %s52 = sphi 0, %s50
      %s53 = sphi 0, %s52
      %s67 = sphi 0, %s53
      %s71 = sphi 0, %s71
      %s73 = sphi 0, %s71
      %s74 = sphi 0, %s73
      %s88 = sphi 0, %s74
      %s94 = sphi 0, %s96
      %s97 = sphi 0, %s94
      %s98 = sphi 0, %s97
      %s114 = sphi 0, %s98
    $region4: #{tpu_custom_call.1} parent=1 // loop_header_branch
      %19 = sbr.rel (%p17) target = $region8
    $region5: #{tpu_custom_call.1} parent=1 // loop_body
      %s21 = ssub.s32 %s16, 1
      %s22 = ssub.s32 %s16, 2
      %s23 = sadd.s32 %s16, 1
      %s24 = ssub.s32 %s16, %s23
      %p25 = scmp.eq.s32.totalorder %s24, 0
      %s27 = sadd.s32 %s26, 1
      %s28 = scalar_select %p25, %s26, %s27
      %p31 = pneg %p25
      %p32 = scmp.eq.s32.totalorder %s16, 2
      %p33 = por %p31, %p32
      %p34 = scmp.ne.s32.totalorder %s26, %s29
      %p35 = scmp.eq.s32.totalorder %s16, 0
      %p36 = por %p34, %p35
      %p37 = scmp.ne.s32.totalorder %s26, %s29
      %p38 = scmp.eq.s32.totalorder %s21, 2
      %p39 = por %p37, %p38
      %p40 = scmp.ne.s32.totalorder %s29, %s30
      %p41 = scmp.eq.s32.totalorder %s21, 0
      %p42 = por %p40, %p41
      %p43 = scmp.ne.s32.totalorder %s29, %s30
      %p44 = scmp.eq.s32.totalorder %s22, 2
      %p45 = por %p43, %p44
      %p47 = scmp.ne.s32.totalorder %s30, %s46
      %p48 = scmp.eq.s32.totalorder %s22, 0
      %p49 = por %p47, %p48
      %s51 = sadd.s32 %s50, 1
      %p54 = scmp.eq.s32.totalorder %s16, 2
      %p55 = scmp.ne.s32.totalorder %s50, %s52
      %p56 = scmp.eq.s32.totalorder %s16, 0
      %p57 = por %p55, %p56
      %p58 = scmp.ne.s32.totalorder %s50, %s52
      %p59 = scmp.eq.s32.totalorder %s21, 2
      %p60 = por %p58, %p59
      %p61 = scmp.ne.s32.totalorder %s52, %s53
      %p62 = scmp.eq.s32.totalorder %s21, 0
      %p63 = por %p61, %p62
      %p64 = scmp.ne.s32.totalorder %s52, %s53
      %p65 = scmp.eq.s32.totalorder %s22, 2
      %p66 = por %p64, %p65
      %p68 = scmp.ne.s32.totalorder %s53, %s67
      %p69 = scmp.eq.s32.totalorder %s22, 0
      %p70 = por %p68, %p69
      %s72 = sadd.s32 %s71, 1
      %p75 = scmp.eq.s32.totalorder %s16, 2
      %p76 = scmp.ne.s32.totalorder %s71, %s73
      %p77 = scmp.eq.s32.totalorder %s16, 0
      %p78 = por %p76, %p77
      %p79 = scmp.ne.s32.totalorder %s71, %s73
      %p80 = scmp.eq.s32.totalorder %s21, 2
      %p81 = por %p79, %p80
      %p82 = scmp.ne.s32.totalorder %s73, %s74
      %p83 = scmp.eq.s32.totalorder %s21, 0
      %p84 = por %p82, %p83
      %p85 = scmp.ne.s32.totalorder %s73, %s74
      %p86 = scmp.eq.s32.totalorder %s22, 2
      %p87 = por %p85, %p86
      %p89 = scmp.ne.s32.totalorder %s74, %s88
      %p90 = scmp.eq.s32.totalorder %s22, 0
      %p91 = por %p89, %p90
      %s92 = ssub.s32 %s16, %s23
      %p93 = scmp.eq.s32.totalorder %s92, 0
      %s95 = sadd.s32 %s94, 1
      %s96 = scalar_select %p93, %s94, %s95
      %p99 = pneg %p93
      %p100 = scmp.eq.s32.totalorder %s16, 2
      %p101 = por %p99, %p100
      %p102 = scmp.ne.s32.totalorder %s94, %s97
      %p103 = scmp.eq.s32.totalorder %s16, 0
      %p104 = por %p102, %p103
      %p105 = scmp.ne.s32.totalorder %s94, %s97
      %p106 = scmp.eq.s32.totalorder %s21, 2
      %p107 = por %p105, %p106
      %p108 = scmp.ne.s32.totalorder %s97, %s98
      %p109 = scmp.eq.s32.totalorder %s21, 0
      %p110 = por %p108, %p109
      %p111 = scmp.ne.s32.totalorder %s97, %s98
      %p112 = scmp.eq.s32.totalorder %s22, 2
      %p113 = por %p111, %p112
      %p115 = scmp.ne.s32.totalorder %s98, %s114
      %p116 = scmp.eq.s32.totalorder %s22, 0
      %p117 = por %p115, %p116
      %p118 = scmp.le.s32.totalorder 1, %s16
      %p119 = scmp.lt.s32.totalorder %s16, 4
      %p120 = pnand %p118, %p119
      %p121 = pneg %p120
      // Predicated region
      $region9: #{tpu_custom_call.1} parent=5 // pred_check
        _
      $region10: #{tpu_custom_call.1} parent=5 // pred_check_branch
        %123 = sbr.rel (%p120) target = $region12
      $region11: #{tpu_custom_call.1} parent=5 // pred_region
        %s124 = ssub.s32 %s16, 1
        // Predicated region
        $region13: #{tpu_custom_call.1} parent=11 // pred_check
          %p125 = pneg %p63
        $region14: #{tpu_custom_call.1} parent=11 // pred_check_branch
          %127 = sbr.rel (%p125) target = $region16
        $region15: #{tpu_custom_call.1} parent=11 // pred_region
          %129 = vsyncadd [#allocation6], 0
          %s130 = sshll.u32 %s1, 4
          %s131 = int_to_ptr.hbm [resolvable:$true] %s130
          %s132 = sshll.u32 [#allocation5], 4
          %s133 = int_to_ptr.vmem [resolvable:$true] %s132
          %138 = dma.hbm_to_vmem [thread:$0]  %s131, 2048, %s133, [#allocation6], 128, 128, 8
        $region16: #{tpu_custom_call.1} parent=11 // pred_fallthru
          _
        // Predicated region
        $region17: #{tpu_custom_call.1} parent=11 // pred_check
          %p139 = pneg %p84
        $region18: #{tpu_custom_call.1} parent=11 // pred_check_branch
          %141 = sbr.rel (%p139) target = $region20
        $region19: #{tpu_custom_call.1} parent=11 // pred_region
          _
        $region20: #{tpu_custom_call.1} parent=11 // pred_fallthru
          _
      $region12: #{tpu_custom_call.1} parent=5 // pred_fallthru
        _
      %p142 = scmp.lt.s32.totalorder %s16, 3
      // Predicated region
      $region21: #{tpu_custom_call.1} parent=5 // pred_check
        %p143 = pneg %p142
      $region22: #{tpu_custom_call.1} parent=5 // pred_check_branch
        %145 = sbr.rel (%p143) target = $region24
      $region23: #{tpu_custom_call.1} parent=5 // pred_region
        // Predicated region
        $region25: #{tpu_custom_call.1} parent=23 // pred_check
          %p146 = pneg %p36
        $region26: #{tpu_custom_call.1} parent=23 // pred_check_branch
          %148 = sbr.rel (%p146) target = $region28
        $region27: #{tpu_custom_call.1} parent=23 // pred_region
          %s149 = sand.u32 %s26, 1
          %s150 = scalar_lea.sflag [#allocation3], %s149
          %s151 = sand.u32 %s26, 1
          %s152 = smul.addr %s151, 128
          %s153 = scalar_lea.vmem [#allocation2], %s152
          %s154 = smul.u32 16, %s16
          %156 = vsyncadd %s150, 0
          %s157 = smul.addr %s154, 8
          %s158 = scalar_lea.hbm %s0, %s157
          %s159 = sshll.u32 %s158, 4
          %s160 = int_to_ptr.hbm [resolvable:$true] %s159
          %s161 = sshll.u32 %s153, 4
          %s162 = int_to_ptr.vmem [resolvable:$true] %s161
          %167 = dma.hbm_to_vmem [thread:$0]  %s160, 2048, %s162, %s150, 128, 128, 8
        $region28: #{tpu_custom_call.1} parent=23 // pred_fallthru
          _
      $region24: #{tpu_custom_call.1} parent=5 // pred_fallthru
        _
      %p168 = scmp.le.s32.totalorder 1, %s16
      %p169 = scmp.lt.s32.totalorder %s16, 4
      %p170 = pnand %p168, %p169
      %p171 = pneg %p170
      // Predicated region
      $region29: #{tpu_custom_call.1} parent=5 // pred_check
        _
      $region30: #{tpu_custom_call.1} parent=5 // pred_check_branch
        %173 = sbr.rel (%p170) target = $region32
      $region31: #{tpu_custom_call.1} parent=5 // pred_region
        %s174 = ssub.s32 %s16, 1
        %s175 = sand.u32 %s29, 1
        %s176 = scalar_lea.sflag [#allocation3], %s175
        %s177 = sand.u32 %s29, 1
        %s178 = smul.addr %s177, 128
        %s179 = scalar_lea.vmem [#allocation2], %s178
        // Predicated region
        $region33: #{tpu_custom_call.1} parent=31 // pred_check
          %p180 = pneg %p42
        $region34: #{tpu_custom_call.1} parent=31 // pred_check_branch
          %182 = sbr.rel (%p180) target = $region36
        $region35: #{tpu_custom_call.1} parent=31 // pred_region
          %184 = dma.done %s176, 2048
        $region36: #{tpu_custom_call.1} parent=31 // pred_fallthru
          _
        // Predicated region
        $region37: #{tpu_custom_call.1} parent=31 // pred_check
          %p185 = pneg %p63
        $region38: #{tpu_custom_call.1} parent=31 // pred_check_branch
          %187 = sbr.rel (%p185) target = $region40
        $region39: #{tpu_custom_call.1} parent=31 // pred_region
          %189 = dma.done [#allocation6], 2048
        $region40: #{tpu_custom_call.1} parent=31 // pred_fallthru
          _
        %s190 = sand.u32 %s29, 1
        %s191 = scalar_lea.sflag [#allocation3], %s190
        %s192 = sand.u32 %s29, 1
        %s193 = smul.addr %s192, 128
        %s194 = scalar_lea.vmem [#allocation2], %s193
        %p195 = pneg %p42
        %p196 = pneg %p39
        %p197 = pneg %p63
        %p198 = pneg %p60
        %p199 = pneg %p84
        %p200 = pneg %p81
        %p201 = pneg %p110
        %p202 = pneg %p107
        %s203 = sand.u32 %s97, 1
        %s204 = scalar_lea.sflag [#allocation4], %s203
        %s205 = sand.u32 %s97, 1
        %s206 = smul.addr %s205, 64
        %s207 = scalar_lea.vmem [#allocation7], %s206
        %s208 = smul.u32 16, %s21
        %s209 = smul.u32 16, %s21
        %v210 = vld [vmem:[%s179] sm:$0xff]
        %v211 = vld [vmem:[%s179 + $0x8] sm:$0xff]
        %v212 = vld [vmem:[%s179 + $0x10] sm:$0xff]
        %v213 = vld [vmem:[%s179 + $0x18] sm:$0xff]
        %v214 = vld [vmem:[%s179 + $0x20] sm:$0xff]
        %v215 = vld [vmem:[%s179 + $0x28] sm:$0xff]
        %v216 = vld [vmem:[%s179 + $0x30] sm:$0xff]
        %v217 = vld [vmem:[%s179 + $0x38] sm:$0xff]
        %v218 = vld [vmem:[%s179 + $0x40] sm:$0xff]
        %v219 = vld [vmem:[%s179 + $0x48] sm:$0xff]
        %v220 = vld [vmem:[%s179 + $0x50] sm:$0xff]
        %v221 = vld [vmem:[%s179 + $0x58] sm:$0xff]
        %v222 = vld [vmem:[%s179 + $0x60] sm:$0xff]
        %v223 = vld [vmem:[%s179 + $0x68] sm:$0xff]
        %v224 = vld [vmem:[%s179 + $0x70] sm:$0xff]
        %v225 = vld [vmem:[%s179 + $0x78] sm:$0xff]
        %v226 = vld [vmem:[#allocation5] sm:$0xff]
        %v227 = vld [vmem:[#allocation5 + $0x8] sm:$0xff]
        %v228 = vld [vmem:[#allocation5 + $0x10] sm:$0xff]
        %v229 = vld [vmem:[#allocation5 + $0x18] sm:$0xff]
        %v230 = vld [vmem:[#allocation5 + $0x20] sm:$0xff]
        %v231 = vld [vmem:[#allocation5 + $0x28] sm:$0xff]
        %v232 = vld [vmem:[#allocation5 + $0x30] sm:$0xff]
        %v233 = vld [vmem:[#allocation5 + $0x38] sm:$0xff]
        %v234 = vld [vmem:[#allocation5 + $0x40] sm:$0xff]
        %v235 = vld [vmem:[#allocation5 + $0x48] sm:$0xff]
        %v236 = vld [vmem:[#allocation5 + $0x50] sm:$0xff]
        %v237 = vld [vmem:[#allocation5 + $0x58] sm:$0xff]
        %v238 = vld [vmem:[#allocation5 + $0x60] sm:$0xff]
        %v239 = vld [vmem:[#allocation5 + $0x68] sm:$0xff]
        %v240 = vld [vmem:[#allocation5 + $0x70] sm:$0xff]
        %v241 = vld [vmem:[#allocation5 + $0x78] sm:$0xff]
        %v242 = vld [vmem:[%s2] sm:$0x1]
        %v244 = vperm.slane %v242, 0
        %246 = vmatpush.msra.mxu0 %v241
        %247 = vmatpush.msra.mxu0 %v240
        %248 = vmatpush.msra.mxu0 %v239
        %249 = vmatpush.msra.mxu0 %v238
        %250 = vmatpush.msra.mxu0 %v237
        %251 = vmatpush.msra.mxu0 %v236
        %252 = vmatpush.msra.mxu0 %v235
        %253 = vmatpush.msra.mxu0 %v234
        %254 = vmatpush.msra.mxu0 %v233
        %255 = vmatpush.msra.mxu0 %v232
        %256 = vmatpush.msra.mxu0 %v231
        %257 = vmatpush.msra.mxu0 %v230
        %258 = vmatpush.msra.mxu0 %v229
        %259 = vmatpush.msra.mxu0 %v228
        %260 = vmatpush.msra.mxu0 %v227
        %261 = vmatpush.msra.mxu0 %v226
        %262 = vmatmul.f32.gmra.mxu0 %v210
        %v263 = vpop.f32.mrf.mxu0
        %v264 = vadd.f32 %v244, %v263
        %265 = vmatmul.f32.gmra.mxu0 %v211
        %v266 = vpop.f32.mrf.mxu0
        %v267 = vadd.f32 %v244, %v266
        %268 = vmatmul.f32.gmra.mxu0 %v212
        %v269 = vpop.f32.mrf.mxu0
        %v270 = vadd.f32 %v244, %v269
        %271 = vmatmul.f32.gmra.mxu0 %v213
        %v272 = vpop.f32.mrf.mxu0
        %v273 = vadd.f32 %v244, %v272
        %274 = vmatmul.f32.gmra.mxu0 %v214
        %v275 = vpop.f32.mrf.mxu0
        %v276 = vadd.f32 %v244, %v275
        %277 = vmatmul.f32.gmra.mxu0 %v215
        %v278 = vpop.f32.mrf.mxu0
        %v279 = vadd.f32 %v244, %v278
        %280 = vmatmul.f32.gmra.mxu0 %v216
        %v281 = vpop.f32.mrf.mxu0
        %v282 = vadd.f32 %v244, %v281
        %283 = vmatmul.f32.gmra.mxu0 %v217
        %v284 = vpop.f32.mrf.mxu0
        %v285 = vadd.f32 %v244, %v284
        %286 = vmatmul.f32.gmra.mxu0 %v218
        %v287 = vpop.f32.mrf.mxu0
        %v288 = vadd.f32 %v244, %v287
        %289 = vmatmul.f32.gmra.mxu0 %v219
        %v290 = vpop.f32.mrf.mxu0
        %v291 = vadd.f32 %v244, %v290
        %292 = vmatmul.f32.gmra.mxu0 %v220
        %v293 = vpop.f32.mrf.mxu0
        %v294 = vadd.f32 %v244, %v293
        %295 = vmatmul.f32.gmra.mxu0 %v221
        %v296 = vpop.f32.mrf.mxu0
        %v297 = vadd.f32 %v244, %v296
        %298 = vmatmul.f32.gmra.mxu0 %v222
        %v299 = vpop.f32.mrf.mxu0
        %v300 = vadd.f32 %v244, %v299
        %301 = vmatmul.f32.gmra.mxu0 %v223
        %v302 = vpop.f32.mrf.mxu0
        %v303 = vadd.f32 %v244, %v302
        %304 = vmatmul.f32.gmra.mxu0 %v224
        %v305 = vpop.f32.mrf.mxu0
        %v306 = vadd.f32 %v244, %v305
        %307 = vmatmul.f32.gmra.mxu0 %v225
        %v308 = vpop.f32.mrf.mxu0
        %v309 = vadd.f32 %v244, %v308
        %310 = vdwg.mxu0
        %v311 = vpack.c.bf16 %v264, %v264
        %v312 = vpack.c.bf16 %v267, %v267
        %v313 = vpack.c.bf16 %v270, %v270
        %v314 = vpack.c.bf16 %v273, %v273
        %v315 = vpack.c.bf16 %v276, %v276
        %v316 = vpack.c.bf16 %v279, %v279
        %v317 = vpack.c.bf16 %v282, %v282
        %v318 = vpack.c.bf16 %v285, %v285
        %v319 = vpack.c.bf16 %v288, %v288
        %v320 = vpack.c.bf16 %v291, %v291
        %v321 = vpack.c.bf16 %v294, %v294
        %v322 = vpack.c.bf16 %v297, %v297
        %v323 = vpack.c.bf16 %v300, %v300
        %v324 = vpack.c.bf16 %v303, %v303
        %v325 = vpack.c.bf16 %v306, %v306
        %v326 = vpack.c.bf16 %v309, %v309
        %327 = vst [vmem:[%s207] sm:$0xf] %v311
        %328 = vst [vmem:[%s207 + $0x4] sm:$0xf] %v312
        %329 = vst [vmem:[%s207 + $0x8] sm:$0xf] %v313
        %330 = vst [vmem:[%s207 + $0xc] sm:$0xf] %v314
        %331 = vst [vmem:[%s207 + $0x10] sm:$0xf] %v315
        %332 = vst [vmem:[%s207 + $0x14] sm:$0xf] %v316
        %333 = vst [vmem:[%s207 + $0x18] sm:$0xf] %v317
        %334 = vst [vmem:[%s207 + $0x1c] sm:$0xf] %v318
        %335 = vst [vmem:[%s207 + $0x20] sm:$0xf] %v319
        %336 = vst [vmem:[%s207 + $0x24] sm:$0xf] %v320
        %337 = vst [vmem:[%s207 + $0x28] sm:$0xf] %v321
        %338 = vst [vmem:[%s207 + $0x2c] sm:$0xf] %v322
        %339 = vst [vmem:[%s207 + $0x30] sm:$0xf] %v323
        %340 = vst [vmem:[%s207 + $0x34] sm:$0xf] %v324
        %341 = vst [vmem:[%s207 + $0x38] sm:$0xf] %v325
        %342 = vst [vmem:[%s207 + $0x3c] sm:$0xf] %v326
        %s343 = sand.u32 %s97, 1
        %s344 = scalar_lea.sflag [#allocation4], %s343
        %s345 = sand.u32 %s97, 1
        %s346 = smul.addr %s345, 64
        %s347 = scalar_lea.vmem [#allocation7], %s346
        // Predicated region
        $region41: #{tpu_custom_call.1} parent=31 // pred_check
          %p348 = pneg %p107
        $region42: #{tpu_custom_call.1} parent=31 // pred_check_branch
          %350 = sbr.rel (%p348) target = $region44
        $region43: #{tpu_custom_call.1} parent=31 // pred_region
          %s351 = smul.u32 16, %s21
          %353 = vsyncadd %s344, 0
          %s354 = smul.addr %s351, 4
          %s355 = scalar_lea.hbm %s3, %s354
          %s356 = sshll.u32 %s347, 4
          %s357 = int_to_ptr.vmem [resolvable:$true] %s356
          %s358 = sshll.u32 %s355, 4
          %s359 = int_to_ptr.hbm [resolvable:$true] %s358
          %364 = dma.vmem_to_hbm [thread:$0]  %s357, 1024, %s359, %s344, 64, 64, 4
        $region44: #{tpu_custom_call.1} parent=31 // pred_fallthru
          _
      $region32: #{tpu_custom_call.1} parent=5 // pred_fallthru
        _
      %p365 = scmp.le.s32.totalorder 2, %s16
      // Predicated region
      $region45: #{tpu_custom_call.1} parent=5 // pred_check
        %p366 = pneg %p365
      $region46: #{tpu_custom_call.1} parent=5 // pred_check_branch
        %368 = sbr.rel (%p366) target = $region48
      $region47: #{tpu_custom_call.1} parent=5 // pred_region
        %s369 = ssub.s32 %s16, 2
        // Predicated region
        $region49: #{tpu_custom_call.1} parent=47 // pred_check
          %p370 = pneg %p113
        $region50: #{tpu_custom_call.1} parent=47 // pred_check_branch
          %372 = sbr.rel (%p370) target = $region52
        $region51: #{tpu_custom_call.1} parent=47 // pred_region
          %s373 = sand.u32 %s98, 1
          %s374 = scalar_lea.sflag [#allocation4], %s373
          %s375 = sand.u32 %s98, 1
          %s376 = smul.addr %s375, 64
          %s377 = scalar_lea.vmem [#allocation7], %s376
          %379 = dma.done %s374, 1024
        $region52: #{tpu_custom_call.1} parent=47 // pred_fallthru
          _
      $region48: #{tpu_custom_call.1} parent=5 // pred_fallthru
        _
    $region6: #{tpu_custom_call.1} parent=1 // loop_footer
      %s20 = sadd.s32 1, %s16
    $region7: #{tpu_custom_call.1} parent=1 // loop_footer_branch
      %15 = sbr.rel target = $region3
    $region8: #{tpu_custom_call.1} parent=1 // loop_exit
      _
    %380 = vsyncpa [#allocation3], 1
    %s381 = scalar_lea.sflag [#allocation3], 1
    %382 = vsyncpa %s381, 1
    %383 = vsyncpa [#allocation6], 1
    %384 = vsyncpa [#allocation4], 1
    %s385 = scalar_lea.sflag [#allocation4], 1
    %386 = vsyncpa %s385, 1

</llo_original>
